<compile_context>
chip_gen: v6e
topology: v6e:2x2x1
jax: 0.10.0
libtpu: 0.0.40
codegen_flags: <defaults>
</compile_context>

<pallas_src>
import functools

import jax
import jax.numpy as jnp
from jax.experimental import pallas as pl
from jax.experimental.pallas import tpu as pltpu


def _round_up(x, m):
    return ((x + m - 1) // m) * m


def _sublane(itemsize):
    # Native sublane packing: f32 -> 8 rows per vreg, bf16 -> 16.
    return 32 // itemsize


def _vmem_budget_bytes():
    """Generation-aware (picker_budget, vmem_limit) in bytes."""
    try:
        cap = int(pltpu.get_tpu_info().vmem_capacity_bytes)
    except Exception:  # conservative fallback: v7x has 64 MiB per TensorCore
        cap = 64 * 1024 * 1024
    budget = min(cap * 5 // 8, 96 * 1024 * 1024)   # v7x ~40 MiB, v5e/v6e ~80 MiB
    limit = min(budget + 8 * 1024 * 1024, cap)
    return budget, limit


def _pick_col_tile(fh, h2p, w_itemsize, budget):
    """Output-column tile (multiple of 128).  Keeps the resident weight slab under
    ~1/3 of the VMEM budget; for typical head sizes returns h2p (grid_cols == 1)."""
    fh_pad = _round_up(fh, _sublane(w_itemsize))
    bytes_per_128cols = fh_pad * 128 * w_itemsize
    max_col_blocks = max(1, (budget // 3) // bytes_per_128cols)
    return int(min(h2p, max_col_blocks * 128))
    # TODO(synk): for truly enormous Fh a K (feature) grid axis + accumulator
    # would be needed; out of scope for typical decoder-head sizes.


def _pick_row_tile(n_rows, fh, tile_h2, x_itemsize, w_itemsize, out_itemsize,
                   budget, n_col_blocks):
    """Largest row tile (multiple of the streamed dtype's sublane packing) whose
    (8,128)-padded, double-buffered footprint plus the weight slab fits the
    budget.  Keeps >= 2-4 row steps for large N (megacore / pipelining)."""
    if n_rows < 8:
        return n_rows                                    # full-extent block
    sub = 16 if (x_itemsize == 2 and n_rows >= 16) else 8
    fh_lanes = _round_up(fh, 128)
    w_bufs = 1 if n_col_blocks == 1 else 2               # invariant weights -> 1 buffer
    resident = (w_bufs * _round_up(fh, _sublane(w_itemsize)) * tile_h2 * w_itemsize
                + 2 * 8 * tile_h2 * 4)                   # bias (f32), counted generously
    tile = min(1024, (n_rows // sub) * sub)
    if n_rows >= 1024:
        # guarantee several row steps so v7x's 2 TCs both get work
        tile = min(tile, max(512, _round_up(pl.cdiv(n_rows, 4), sub)))
    while tile > sub:
        footprint = (resident
                     + 2 * tile * fh_lanes * x_itemsize      # x tile, double-buffered
                     + 2 * tile * tile_h2 * out_itemsize)    # out tile, double-buffered
        if footprint <= budget:
            break
        tile -= sub
    return max(tile, sub)


def _node_decoder_kernel(x_ref, w_ref, b_ref, o_ref):
    # x_ref : (tile_n, Fh)       streamed rows (caller dtype)
    # w_ref : (Fh, tile_h2)      fused [src|dst] weights (compute dtype), resident
    # b_ref : (1, tile_h2)       fused bias, f32
    # o_ref : (tile_n, tile_h2)  lane-dense output tile
    x = x_ref[...]
    w = w_ref[...]
    if x.dtype != w.dtype:
        x = x.astype(w.dtype)            # in-VMEM cast; avoids an extra HBM pass over x
    acc = jnp.dot(x, w, preferred_element_type=jnp.float32)
    o_ref[...] = (acc + b_ref[...]).astype(o_ref.dtype)   # bias add stays in f32


def fuse_node_decoder_params(w_src, b_src, w_dst, b_dst, *,
                             compute_dtype=jnp.bfloat16):
    """One-time fusion of the two Linear heads (do NOT call per forward step:
    the transpose/concat costs an Fh*2H HBM round trip)."""
    h, _fh = w_src.shape
    h2 = 2 * h
    h2p = _round_up(h2, 128)                  # lane-dense output width (unmasked stores)
    w_cat = jnp.concatenate([w_src.T, w_dst.T], axis=1)        # (Fh, 2H)
    b_cat = jnp.concatenate([b_src, b_dst]).reshape(1, h2)     # (1, 2H)
    if h2p != h2:
        w_cat = jnp.pad(w_cat, ((0, 0), (0, h2p - h2)))
        b_cat = jnp.pad(b_cat, ((0, 0), (0, h2p - h2)))
    return w_cat.astype(compute_dtype), b_cat.astype(jnp.float32)


@functools.partial(jax.jit, static_argnames=("h2",))
def node_decoder_fused(x, w_cat, b_cat, *, h2):
    """Hot path: x (N, Fh) @ fused weights -> (N, 2, H)."""
    n, fh = x.shape
    if w_cat.shape[0] != fh:
        raise ValueError("w_cat / x feature-dim mismatch")
    h2p = w_cat.shape[1]
    h = h2 // 2

    x_item = jnp.dtype(x.dtype).itemsize
    w_item = jnp.dtype(w_cat.dtype).itemsize
    out_dtype = x.dtype
    out_item = jnp.dtype(out_dtype).itemsize

    budget, vmem_limit = _vmem_budget_bytes()
    tile_h2 = _pick_col_tile(fh, h2p, w_item, budget)
    grid_cols = pl.cdiv(h2p, tile_h2)
    tile_n = _pick_row_tile(n, fh, tile_h2, x_item, w_item, out_item,
                            budget, grid_cols)
    grid_rows = pl.cdiv(n, tile_n)

    # Weights/bias are grid-invariant when fully resident: single-buffer them.
    inv_mode = pl.Buffered(1) if grid_cols == 1 else None

    cost = pl.CostEstimate(
        flops=2 * n * fh * h2p,
        transcendentals=0,
        bytes_accessed=(n * fh * x_item + fh * h2p * w_item
                        + h2p * 4 + n * h2p * out_item),
    )

    out_flat = pl.pallas_call(
        _node_decoder_kernel,
        out_shape=jax.ShapeDtypeStruct((n, h2p), out_dtype),
        grid=(grid_cols, grid_rows),            # rows innermost: weight slab reused
        in_specs=[
            pl.BlockSpec((tile_n, fh), lambda j, i: (i, 0)),
            pl.BlockSpec((fh, tile_h2), lambda j, i: (0, j), pipeline_mode=inv_mode),
            pl.BlockSpec((1, tile_h2), lambda j, i: (0, j), pipeline_mode=inv_mode),
        ],
        out_specs=pl.BlockSpec((tile_n, tile_h2), lambda j, i: (i, j)),
        compiler_params=pltpu.CompilerParams(
            dimension_semantics=("parallel", "parallel"),
            vmem_limit_bytes=vmem_limit,
        ),
        cost_estimate=cost,
    )(x, w_cat, b_cat)

    # Row-major (N, 2H) -> (N, 2, H) is a free reshape and matches
    # torch.stack((src, dst), dim=1); one cheap slice drops the 128-lane padding.
    out = out_flat if h2p == h2 else out_flat[:, :h2]
    return out.reshape(n, 2, h)


def node_decoder(x, w_src, b_src, w_dst, b_dst, *, compute_dtype=jnp.bfloat16):
    """One-call convenience wrapper.  In a real model, hoist
    fuse_node_decoder_params() out of the step function and reuse its result."""
    w_cat, b_cat = fuse_node_decoder_params(w_src, b_src, w_dst, b_dst,
                                            compute_dtype=compute_dtype)
    return node_decoder_fused(x, w_cat, b_cat, h2=2 * w_src.shape[0])


if __name__ == "__main__":
    # Small shapes consistent with the module: N tokens, Fh input features, H output dim.
    N, Fh, H = 8, 32, 32

    key = jax.random.PRNGKey(0)
    kx, kws, kbs, kwd, kbd = jax.random.split(key, 5)

    # Deterministic parameter init mimicking torch.nn.Linear (uniform +-1/sqrt(Fh)).
    bound = 1.0 / (Fh ** 0.5)
    x = jax.random.normal(kx, (N, Fh), dtype=jnp.float32)
    w_src = jax.random.uniform(kws, (H, Fh), jnp.float32, -bound, bound)
    b_src = jax.random.uniform(kbs, (H,), jnp.float32, -bound, bound)
    w_dst = jax.random.uniform(kwd, (H, Fh), jnp.float32, -bound, bound)
    b_dst = jax.random.uniform(kbd, (H,), jnp.float32, -bound, bound)

    # Pure-JAX reference (same semantics as the PyTorch forward).
    ref = jnp.stack((x @ w_src.T + b_src, x @ w_dst.T + b_dst), axis=1)

    # f32 path (tight numerics check), via the one-call wrapper.
    out_f32 = node_decoder(x, w_src, b_src, w_dst, b_dst, compute_dtype=jnp.float32)
    out_f32 = jax.block_until_ready(out_f32)
    assert out_f32.shape == (N, 2, H), out_f32.shape
    assert jnp.allclose(out_f32, ref, atol=1e-5, rtol=1e-5)

    # bf16 streamed path (default): fuse params once, stream bf16 activations.
    w_cat, b_cat = fuse_node_decoder_params(w_src, b_src, w_dst, b_dst)
    out_bf16 = node_decoder_fused(x.astype(jnp.bfloat16), w_cat, b_cat, h2=2 * H)
    out_bf16 = jax.block_until_ready(out_bf16)
    assert out_bf16.shape == (N, 2, H), out_bf16.shape
    assert jnp.allclose(out_bf16.astype(jnp.float32), ref, atol=3e-2, rtol=3e-2)

    print("KERNEL_OK")
</pallas_src>

<mosaic_0001>
module attributes {stable_mosaic.version = 11 : i64} {
  func.func @_node_decoder_kernel(%arg0: i32, %arg1: i32, %arg2: memref<8x32xf32, #tpu.memory_space<vmem>>, %arg3: memref<32x128xf32, #tpu.memory_space<vmem>>, %arg4: memref<1x128xf32, #tpu.memory_space<vmem>>, %arg5: memref<8x128xf32, #tpu.memory_space<vmem>>) attributes {dimension_semantics = [#tpu.dimension_semantics<parallel>, #tpu.dimension_semantics<parallel>], iteration_bounds = array<i64: 1, 1>, scalar_prefetch = 0 : i64, scratch_operands = 0 : i64, tpu.core_type = #tpu.core_type<tc>, window_params = [{transform_indices = @transform_0, window_bounds = array<i64: 8, 32>}, {pipeline_mode = #tpu.pipeline_mode<synchronous>, transform_indices = @transform_1, window_bounds = array<i64: 32, 128>}, {pipeline_mode = #tpu.pipeline_mode<synchronous>, transform_indices = @transform_2, window_bounds = array<i64: 1, 128>}, {transform_indices = @transform_3, window_bounds = array<i64: 8, 128>}]} {
    %c0 = arith.constant 0 : index
    %c0_0 = arith.constant 0 : index
    %0 = vector.load %arg2[%c0, %c0_0] : memref<8x32xf32, #tpu.memory_space<vmem>>, vector<8x32xf32>
    %c0_1 = arith.constant 0 : index
    %c0_2 = arith.constant 0 : index
    %1 = vector.load %arg3[%c0_1, %c0_2] : memref<32x128xf32, #tpu.memory_space<vmem>>, vector<32x128xf32>
    %cst = arith.constant dense<0.000000e+00> : vector<8x128xf32>
    %2 = tpu.matmul %0, %1, %cst {dimension_numbers = #tpu.dot_dimension_numbers<[1], [0], [0], [1], [0, 0, 1, 1], [], []>} : vector<8x32xf32>, vector<32x128xf32>, vector<8x128xf32> -> vector<8x128xf32>
    %c0_3 = arith.constant 0 : index
    %c0_4 = arith.constant 0 : index
    %3 = vector.load %arg4[%c0_3, %c0_4] : memref<1x128xf32, #tpu.memory_space<vmem>>, vector<1x128xf32>
    %4 = vector.broadcast %3 : vector<1x128xf32> to vector<8x128xf32>
    %5 = arith.addf %2, %4 : vector<8x128xf32>
    %c0_5 = arith.constant 0 : index
    %c0_6 = arith.constant 0 : index
    %6 = vector.load %arg5[%c0_5, %c0_6] : memref<8x128xf32, #tpu.memory_space<vmem>>, vector<8x128xf32>
    tpu.vector_store %arg5[%c0_5, %c0_6], %5 {strides = array<i32>} : memref<8x128xf32, #tpu.memory_space<vmem>>, vector<8x128xf32>,
    return
  }
  func.func @transform_0(%arg0: i32, %arg1: i32) -> (i32, i32) {
    %c0_i32 = arith.constant 0 : i32
    %c0_i32_0 = arith.constant 0 : i32
    return %arg1, %c0_i32 : i32, i32
  }
  func.func @transform_1(%arg0: i32, %arg1: i32) -> (i32, i32) {
    %c0_i32 = arith.constant 0 : i32
    %c0_i32_0 = arith.constant 0 : i32
    return %c0_i32, %arg0 : i32, i32
  }
  func.func @transform_2(%arg0: i32, %arg1: i32) -> (i32, i32) {
    %c0_i32 = arith.constant 0 : i32
    %c0_i32_0 = arith.constant 0 : i32
    return %c0_i32, %arg0 : i32, i32
  }
  func.func @transform_3(%arg0: i32, %arg1: i32) -> (i32, i32) {
    %c0_i32 = arith.constant 0 : i32
    return %arg1, %arg0 : i32, i32
  }
}

</mosaic_0001>

<llo_original>
// kernel: node_decoder_fused.1
$region0: #{node_decoder_fused.1}
  #allocation0 [shape = 'u32[]', space=smem, size = 0x4, offset = 0x4, fixed_abs, tag = 'smem constant byte address 0x4 - core index']
  #allocation1 [shape = 'u32[144,128]{1,0:T(1,128)}', space=vmem, size = 0x12000, scoped, tag = 'internal scratch']
  %s0 = inlined_call_operand.hbm [shape: f32[8,32], index: 0, kind: input, shape index: {}]
  %s1 = inlined_call_operand.hbm [shape: f32[32,128], index: 1, kind: input, shape index: {}]
  %s2 = inlined_call_operand.vmem [shape: f32[1,128], index: 2, kind: input, shape index: {}]
  %s3 = inlined_call_operand.vmem [shape: f32[8,128], index: 3, kind: output, shape index: {}]
  %s4 = sld [smem:[#allocation0]]
  $region30: #{node_decoder_fused.1} parent=0
    _
  %s6 = ssub.s32 1, %s4
  %s7 = scalar_select 0, %s6, %s4
  $region1: #{node_decoder_fused.1} parent=0
    #allocation2 [shape = 'u8[4096]{0}', space=vmem, size = 0x1000, scoped, tag = 'input window, operand 0, single buffered']
    #allocation3 [shape = 's32[1]{0}', space=sflag, size = 0x4, scoped, tag = 'scoped memory for node_decoder_fused.1']
    #allocation4 [shape = 'u8[16384]{0}', space=vmem, size = 0x4000, scoped, tag = 'input window, operand 1, single buffered']
    #allocation5 [shape = 's32[1]{0}', space=sflag, size = 0x4, scoped, tag = 'scoped memory for node_decoder_fused.1']
    %8 = vsyncpa [#allocation3], 0
    %9 = vsyncpa [#allocation5], 0
    // Predicated region
    $region2: #{node_decoder_fused.1} parent=1 // pred_check
      _
    $region3: #{node_decoder_fused.1} parent=1 // pred_check_branch
      %11 = sbr.rel (0) target = $region5
    $region4: #{node_decoder_fused.1} parent=1 // pred_region
      %s13 = ssub.s32 128, 128
      %14 = vsyncadd [#allocation3], %s13
      %s16 = sshll.u32 [#allocation2], 4
      %s17 = int_to_ptr.vmem [resolvable:$true] %s16
      %19 = dma.hbm_to_vmem [thread:$0]  %s0, 128, %s17, [#allocation3]
    $region5: #{node_decoder_fused.1} parent=1 // pred_fallthru
      _
    // Predicated region
    $region6: #{node_decoder_fused.1} parent=1 // pred_check
      _
    $region7: #{node_decoder_fused.1} parent=1 // pred_check_branch
      %21 = sbr.rel (0) target = $region9
    $region8: #{node_decoder_fused.1} parent=1 // pred_region
      %s23 = ssub.s32 512, 512
      %24 = vsyncadd [#allocation5], %s23
      %s25 = sshll.u32 [#allocation4], 4
      %s26 = int_to_ptr.vmem [resolvable:$true] %s25
      %31 = dma.hbm_to_vmem [thread:$0]  %s1, 512, %s26, [#allocation5], 128, 128, 8
    $region9: #{node_decoder_fused.1} parent=1 // pred_fallthru
      _
    // Predicated region
    $region10: #{node_decoder_fused.1} parent=1 // pred_check
      _
    $region11: #{node_decoder_fused.1} parent=1 // pred_check_branch
      %33 = sbr.rel (0) target = $region13
    $region12: #{node_decoder_fused.1} parent=1 // pred_region
      _
    $region13: #{node_decoder_fused.1} parent=1 // pred_fallthru
      _
    // Predicated region
    $region14: #{node_decoder_fused.1} parent=1 // pred_check
      _
    $region15: #{node_decoder_fused.1} parent=1 // pred_check_branch
      %35 = sbr.rel (0) target = $region17
    $region16: #{node_decoder_fused.1} parent=1 // pred_region
      %36 = dma.done [#allocation3], 128
    $region17: #{node_decoder_fused.1} parent=1 // pred_fallthru
      _
    // Predicated region
    $region18: #{node_decoder_fused.1} parent=1 // pred_check
      _
    $region19: #{node_decoder_fused.1} parent=1 // pred_check_branch
      %38 = sbr.rel (0) target = $region21
    $region20: #{node_decoder_fused.1} parent=1 // pred_region
      %39 = dma.done [#allocation5], 512
    $region21: #{node_decoder_fused.1} parent=1 // pred_fallthru
      _
    %v40 = vld [vmem:[#allocation2] sm:$0xff]
    %v41 = vld [vmem:[#allocation4] sm:$0xff]
    %v42 = vld [vmem:[#allocation4 + $0x8] sm:$0xff]
    %v43 = vld [vmem:[#allocation4 + $0x10] sm:$0xff]
    %v44 = vld [vmem:[#allocation4 + $0x18] sm:$0xff]
    %v45 = vld [vmem:[%s2] sm:$0x1]
    %v47 = vlaneseq
    %v48 = vshrl.u32 %v47, 7
    %v49 = vsub.s32 0, %v48
    %v50 = vrot.slane %v45, %v49
    %vm52 = vcmask 261120
    %v54 = vsel %vm52, %v40, 0
    %56 = vmatprep.subr.mxu0 0.0
    %57 = vmatpush1.msra.mxu0 0.0
    %58 = vmatprep.subr.mxu0 0.0
    %59 = vmatpush1.msra.mxu0 0.0
    %60 = vmatprep.subr.mxu0 0.0
    %61 = vmatpush1.msra.mxu0 0.0
    %62 = vmatprep.subr.mxu0 0.0
    %63 = vmatpush1.msra.mxu0 0.0
    %64 = vmatprep.subr.mxu0 0.0
    %65 = vmatpush1.msra.mxu0 0.0
    %66 = vmatprep.subr.mxu0 0.0
    %67 = vmatpush1.msra.mxu0 0.0
    %68 = vmatprep.subr.mxu0 0.0
    %69 = vmatpush1.msra.mxu0 0.0
    %70 = vmatprep.subr.mxu0 0.0
    %71 = vmatpush1.msra.mxu0 0.0
    %72 = vmatprep.subr.mxu0 0.0
    %73 = vmatpush1.msra.mxu0 0.0
    %74 = vmatprep.subr.mxu0 0.0
    %75 = vmatpush1.msra.mxu0 0.0
    %76 = vmatprep.subr.mxu0 0.0
    %77 = vmatpush1.msra.mxu0 0.0
    %78 = vmatprep.subr.mxu0 0.0
    %79 = vmatpush1.msra.mxu0 0.0
    %80 = vmatprep.subr.mxu0 0.0
    %81 = vmatpush1.msra.mxu0 %v44
    %82 = vmatprep.subr.mxu0 0.0
    %83 = vmatpush1.msra.mxu0 %v43
    %84 = vmatprep.subr.mxu0 0.0
    %85 = vmatpush1.msra.mxu0 %v42
    %86 = vmatprep.subr.mxu0 0.0
    %87 = vmatpush1.msra.mxu0 %v41
    %88 = vmatprep.subr.mxu0 0.0
    %89 = vmatpush2.msra.mxu0 0.0
    %90 = vmatprep.subr.mxu0 0.0
    %91 = vmatpush2.msra.mxu0 0.0
    %92 = vmatprep.subr.mxu0 0.0
    %93 = vmatpush2.msra.mxu0 0.0
    %94 = vmatprep.subr.mxu0 0.0
    %95 = vmatpush2.msra.mxu0 0.0
    %96 = vmatprep.subr.mxu0 0.0
    %97 = vmatpush2.msra.mxu0 0.0
    %98 = vmatprep.subr.mxu0 0.0
    %99 = vmatpush2.msra.mxu0 0.0
    %100 = vmatprep.subr.mxu0 0.0
    %101 = vmatpush2.msra.mxu0 0.0
    %102 = vmatprep.subr.mxu0 0.0
    %103 = vmatpush2.msra.mxu0 0.0
    %104 = vmatprep.subr.mxu0 0.0
    %105 = vmatpush2.msra.mxu0 0.0
    %106 = vmatprep.subr.mxu0 0.0
    %107 = vmatpush2.msra.mxu0 0.0
    %108 = vmatprep.subr.mxu0 0.0
    %109 = vmatpush2.msra.mxu0 0.0
    %110 = vmatprep.subr.mxu0 0.0
    %111 = vmatpush2.msra.mxu0 0.0
    %112 = vmatprep.subr.mxu0 0.0
    %113 = vmatpush2.msra.mxu0 0.0
    %114 = vmatprep.subr.mxu0 0.0
    %115 = vmatpush2.msra.mxu0 0.0
    %116 = vmatprep.subr.mxu0 0.0
    %117 = vmatpush2.msra.mxu0 0.0
    %118 = vmatprep.subr.mxu0 0.0
    %119 = vmatpush2.msra.mxu0 0.0
    %120 = vmatprep.mubr.f32.mxu0 0.0
    %121 = vmatmul.mubr.f32.gmra.mxu0 %v54
    %v122 = vpop.f32.mrf.mxu0
    %v123 = vadd.f32 %v50, %v122
    %v124 = vpop.f32.mrf.mxu0
    %125 = vdwg.mxu0
    %126 = vst [vmem:[%s3] sm:$0xff] %v123
    // Predicated region
    $region22: #{node_decoder_fused.1} parent=1 // pred_check
      _
    $region23: #{node_decoder_fused.1} parent=1 // pred_check_branch
      %128 = sbr.rel (0) target = $region25
    $region24: #{node_decoder_fused.1} parent=1 // pred_region
      _
    $region25: #{node_decoder_fused.1} parent=1 // pred_fallthru
      _
    // Predicated region
    $region26: #{node_decoder_fused.1} parent=1 // pred_check
      _
    $region27: #{node_decoder_fused.1} parent=1 // pred_check_branch
      %130 = sbr.rel (0) target = $region29
    $region28: #{node_decoder_fused.1} parent=1 // pred_region
      _
    $region29: #{node_decoder_fused.1} parent=1 // pred_fallthru
      _
    %131 = vsyncpa [#allocation3], 1
    %132 = vsyncpa [#allocation5], 1

</llo_original>
